<compile_context>
chip_gen: v6e
topology: v6e:2x2x1
jax: 0.10.0
libtpu: 0.0.40
codegen_flags: <defaults>
</compile_context>

<pallas_src>
import jax
import jax.numpy as jnp
from jax import lax
from jax.experimental import pallas as pl
from jax.experimental.pallas import tpu as pltpu


def basic_block_kernel(x_ref, w1_ref, b1_ref, w2_ref, b2_ref, o_ref, p2_ref):
    # x_ref : (1, H+2, W*Cin)    row-padded input, (w, c) fused on the lane axis
    # w*_ref: (3, W*Cin, W*Cout) banded per-ky weight matrices (BN scale folded)
    # b*_ref: (1, W*Cout)        BN bias tiled across W (f32)
    # o_ref : (1, H, W*Cout)
    # p2_ref: (H+2, W*Cout)      VMEM scratch: row-padded conv1 activation (f32)
    H = o_ref.shape[1]
    WC = o_ref.shape[2]

    xp = x_ref[0]                       # (H+2, W*Cin), loaded once, sliced as a value
    b1 = b1_ref[...]
    b2 = b2_ref[...]

    # ---- conv1 (+ folded bn1 scale): 3 whole-image matmuls, bias + ReLU ----
    acc1 = jnp.dot(xp[0:H], w1_ref[0], preferred_element_type=jnp.float32)
    for ky in (1, 2):
        acc1 = acc1 + jnp.dot(xp[ky:ky + H], w1_ref[ky],
                              preferred_element_type=jnp.float32)
    y1 = jnp.maximum(acc1 + b1, 0.0)    # (H, W*Cout) f32

    # Row-padded activation for conv2: zero only the two halo rows, then one
    # full-lane-width store of the whole interior.
    zrow = jnp.zeros((1, WC), p2_ref.dtype)
    p2_ref[0:1, :] = zrow
    p2_ref[H + 1:H + 2, :] = zrow
    p2_ref[1:H + 1, :] = y1

    # ---- conv2 (+ folded bn2 scale): 3 whole-image matmuls ----
    p2 = p2_ref[...].astype(w2_ref.dtype)   # cast once to the MXU operand dtype
    acc2 = jnp.dot(p2[0:H], w2_ref[0], preferred_element_type=jnp.float32)
    for ky in (1, 2):
        acc2 = acc2 + jnp.dot(p2[ky:ky + H], w2_ref[ky],
                              preferred_element_type=jnp.float32)

    # bias + residual + ReLU, single lane-dense full-block store.
    ident = xp[1:H + 1].astype(jnp.float32)   # rows 1..H == original x
    out = jnp.maximum(acc2 + b2 + ident, 0.0)
    o_ref[0] = out.astype(o_ref.dtype)


def _fold_bn(bn, eps):
    gamma, beta, mean, var = bn
    scale = (gamma / jnp.sqrt(var + eps)).astype(jnp.float32)
    bias = (beta - mean * scale).astype(jnp.float32)
    return scale, bias


def _banded_weights(w_oihw, scale, W, compute_dtype):
    """OIHW 3x3 weights (+ folded BN scale) -> 3 banded (W*Cin, W*Cout) matrices.

    B[ky, wi*Cin+ci, wo*Cout+co] = scale[co] * w[ky, kx=wi-wo+1, ci, co]
    for |wi - wo| <= 1, else 0.  The horizontal taps (and the horizontal zero
    padding) are folded into a block-banded matrix so the convolution becomes
        out_rows = sum_ky  x_rows[ky : ky+H] @ B[ky].
    """
    # OIHW -> (ky, kx, ci, co), with the BN scale folded into output channels.
    w = jnp.transpose(w_oihw, (2, 3, 1, 0)).astype(jnp.float32)
    w = w * scale[None, None, None, :]
    cin, cout = w.shape[2], w.shape[3]

    wi = jnp.arange(W)[:, None]
    wo = jnp.arange(W)[None, :]
    kx = wi - wo + 1                                         # (W, W)
    valid = ((kx >= 0) & (kx <= 2)).astype(jnp.float32)
    blocks = w[:, jnp.clip(kx, 0, 2), :, :]                  # (3, W, W, ci, co)
    blocks = blocks * valid[None, :, :, None, None]
    banded = jnp.transpose(blocks, (0, 1, 3, 2, 4)).reshape(3, W * cin, W * cout)
    return banded.astype(compute_dtype)


def basic_block_pallas(x_nchw, w1_oihw, bn1, w2_oihw, bn2, eps=1e-5,
                       compute_dtype=jnp.float32):
    """x_nchw: (N, C, H, W) f32; weights OIHW; bn* = (gamma, beta, mean, var)."""
    N, Cin, H, W = x_nchw.shape
    Cout = w1_oihw.shape[0]
    assert Cin == Cout, "identity shortcut requires inplanes == planes"
    WCin, WCout = W * Cin, W * Cout

    # NCHW -> NHWC -> (N, H, W*C), then one zero halo row at top and bottom.
    x = jnp.transpose(x_nchw, (0, 2, 3, 1)).astype(jnp.float32)
    x_rows = x.reshape(N, H, WCin)
    x_pad = jnp.pad(x_rows, ((0, 0), (1, 1), (0, 0))).astype(compute_dtype)

    s1, b1 = _fold_bn(bn1, eps)
    s2, b2 = _fold_bn(bn2, eps)
    B1 = _banded_weights(w1_oihw, s1, W, compute_dtype)      # (3, WCin, WCout)
    B2 = _banded_weights(w2_oihw, s2, W, compute_dtype)      # (3, WCout, WCout)
    b1_flat = jnp.tile(b1, W).reshape(1, WCout)              # biases stay f32
    b2_flat = jnp.tile(b2, W).reshape(1, WCout)

    grid_spec = pltpu.PrefetchScalarGridSpec(
        num_scalar_prefetch=0,
        grid=(N,),
        in_specs=[
            pl.BlockSpec((1, H + 2, WCin), lambda n: (n, 0, 0)),
            pl.BlockSpec((3, WCin, WCout), lambda n: (0, 0, 0)),
            pl.BlockSpec((1, WCout), lambda n: (0, 0)),
            pl.BlockSpec((3, WCout, WCout), lambda n: (0, 0, 0)),
            pl.BlockSpec((1, WCout), lambda n: (0, 0)),
        ],
        out_specs=pl.BlockSpec((1, H, WCout), lambda n: (n, 0, 0)),
        scratch_shapes=[pltpu.VMEM((H + 2, WCout), jnp.float32)],
    )

    out_rows = pl.pallas_call(
        basic_block_kernel,
        out_shape=jax.ShapeDtypeStruct((N, H, WCout), jnp.float32),
        grid_spec=grid_spec,
        compiler_params=pltpu.CompilerParams(
            dimension_semantics=("parallel",),
            vmem_limit_bytes=32 * 1024 * 1024),
    )(x_pad, B1, b1_flat, B2, b2_flat)

    out = out_rows.reshape(N, H, W, Cout)
    return jnp.transpose(out, (0, 3, 1, 2))


def basic_block_reference(x_nchw, w1_oihw, bn1, w2_oihw, bn2, eps=1e-5):
    """Pure-JAX reference (lax conv), same NCHW in/out semantics."""
    x = jnp.transpose(x_nchw, (0, 2, 3, 1))
    w1 = jnp.transpose(w1_oihw, (2, 3, 1, 0))
    w2 = jnp.transpose(w2_oihw, (2, 3, 1, 0))
    dn = ("NHWC", "HWIO", "NHWC")

    def bn_apply(y, bn):
        g, b, m, v = bn
        return (y - m) / jnp.sqrt(v + eps) * g + b

    out = lax.conv_general_dilated(x, w1, (1, 1), "SAME", dimension_numbers=dn)
    out = jnp.maximum(bn_apply(out, bn1), 0.0)
    out = lax.conv_general_dilated(out, w2, (1, 1), "SAME", dimension_numbers=dn)
    out = bn_apply(out, bn2) + x
    out = jnp.maximum(out, 0.0)
    return jnp.transpose(out, (0, 3, 1, 2))


if __name__ == "__main__":
    key = jax.random.PRNGKey(0)
    N, C, H, W = 2, 8, 16, 16   # inplanes == planes == 8, stride=1, downsample=None

    ks = jax.random.split(key, 11)
    x = jax.random.normal(ks[0], (N, C, H, W), jnp.float32)

    # conv weights (OIHW, PyTorch convention)
    w1 = jax.random.normal(ks[1], (C, C, 3, 3), jnp.float32) * 0.1
    w2 = jax.random.normal(ks[2], (C, C, 3, 3), jnp.float32) * 0.1

    # BatchNorm params (gamma, beta, running_mean, running_var) — eval mode
    bn1 = (jax.random.uniform(ks[3], (C,), jnp.float32, 0.5, 1.5),
           jax.random.normal(ks[4], (C,), jnp.float32) * 0.1,
           jax.random.normal(ks[5], (C,), jnp.float32) * 0.1,
           jax.random.uniform(ks[6], (C,), jnp.float32, 0.5, 1.5))
    bn2 = (jax.random.uniform(ks[7], (C,), jnp.float32, 0.5, 1.5),
           jax.random.normal(ks[8], (C,), jnp.float32) * 0.1,
           jax.random.normal(ks[9], (C,), jnp.float32) * 0.1,
           jax.random.uniform(ks[10], (C,), jnp.float32, 0.5, 1.5))

    ref = jax.block_until_ready(basic_block_reference(x, w1, bn1, w2, bn2))

    # f32 path (reference-exact semantics)
    out = jax.block_until_ready(basic_block_pallas(x, w1, bn1, w2, bn2))
    assert out.shape == (N, C, H, W)
    assert jnp.allclose(out, ref, atol=1e-3, rtol=1e-3), "f32 mismatch vs reference"

    # bf16 MXU operands + f32 accumulation (recommended on v6e/v7x)
    out_bf16 = jax.block_until_ready(
        basic_block_pallas(x, w1, bn1, w2, bn2, compute_dtype=jnp.bfloat16))
    assert jnp.allclose(out_bf16, ref, atol=1e-1, rtol=1e-1), "bf16 mismatch vs reference"

    print("KERNEL_OK")
</pallas_src>

<mosaic_0001>
module attributes {stable_mosaic.version = 11 : i64} {
  func.func @basic_block_kernel(%arg0: i32, %arg1: memref<1x18x128xf32, #tpu.memory_space<vmem>>, %arg2: memref<3x128x128xf32, #tpu.memory_space<vmem>>, %arg3: memref<1x128xf32, #tpu.memory_space<vmem>>, %arg4: memref<3x128x128xf32, #tpu.memory_space<vmem>>, %arg5: memref<1x128xf32, #tpu.memory_space<vmem>>, %arg6: memref<1x16x128xf32, #tpu.memory_space<vmem>>, %arg7: memref<18x128xf32, #tpu.memory_space<vmem>>) attributes {dimension_semantics = [#tpu.dimension_semantics<parallel>], iteration_bounds = array<i64: 2>, scalar_prefetch = 0 : i64, scratch_operands = 1 : i64, tpu.core_type = #tpu.core_type<tc>, window_params = [{transform_indices = @transform_0, window_bounds = array<i64: 1, 18, 128>}, {pipeline_mode = #tpu.pipeline_mode<synchronous>, transform_indices = @transform_1, window_bounds = array<i64: 3, 128, 128>}, {pipeline_mode = #tpu.pipeline_mode<synchronous>, transform_indices = @transform_2, window_bounds = array<i64: 1, 128>}, {pipeline_mode = #tpu.pipeline_mode<synchronous>, transform_indices = @transform_3, window_bounds = array<i64: 3, 128, 128>}, {pipeline_mode = #tpu.pipeline_mode<synchronous>, transform_indices = @transform_4, window_bounds = array<i64: 1, 128>}, {transform_indices = @transform_5, window_bounds = array<i64: 1, 16, 128>}]} {
    %c0 = arith.constant 0 : index
    %c0_0 = arith.constant 0 : index
    %c0_1 = arith.constant 0 : index
    %0 = vector.load %arg1[%c0, %c0_0, %c0_1] : memref<1x18x128xf32, #tpu.memory_space<vmem>>, vector<1x18x128xf32>
    %1 = vector.shape_cast %0 : vector<1x18x128xf32> to vector<18x128xf32>
    %c0_2 = arith.constant 0 : index
    %c0_3 = arith.constant 0 : index
    %2 = vector.load %arg3[%c0_2, %c0_3] : memref<1x128xf32, #tpu.memory_space<vmem>>, vector<1x128xf32>
    %c0_4 = arith.constant 0 : index
    %c0_5 = arith.constant 0 : index
    %3 = vector.load %arg5[%c0_4, %c0_5] : memref<1x128xf32, #tpu.memory_space<vmem>>, vector<1x128xf32>
    %4 = vector.extract_strided_slice %1 {offsets = [0, 0], sizes = [16, 128], strides = [1, 1]} : vector<18x128xf32> to vector<16x128xf32>
    %c0_6 = arith.constant 0 : index
    %c0_7 = arith.constant 0 : index
    %c0_8 = arith.constant 0 : index
    %5 = vector.load %arg2[%c0_6, %c0_7, %c0_8] : memref<3x128x128xf32, #tpu.memory_space<vmem>>, vector<1x128x128xf32>
    %6 = vector.shape_cast %5 : vector<1x128x128xf32> to vector<128x128xf32>
    %cst = arith.constant dense<0.000000e+00> : vector<16x128xf32>
    %7 = tpu.matmul %4, %6, %cst {dimension_numbers = #tpu.dot_dimension_numbers<[1], [0], [0], [1], [0, 0, 1, 1], [], []>} : vector<16x128xf32>, vector<128x128xf32>, vector<16x128xf32> -> vector<16x128xf32>
    %8 = vector.extract_strided_slice %1 {offsets = [1, 0], sizes = [16, 128], strides = [1, 1]} : vector<18x128xf32> to vector<16x128xf32>
    %c1 = arith.constant 1 : index
    %c0_9 = arith.constant 0 : index
    %c0_10 = arith.constant 0 : index
    %9 = vector.load %arg2[%c1, %c0_9, %c0_10] : memref<3x128x128xf32, #tpu.memory_space<vmem>>, vector<1x128x128xf32>
    %10 = vector.shape_cast %9 : vector<1x128x128xf32> to vector<128x128xf32>
    %cst_11 = arith.constant dense<0.000000e+00> : vector<16x128xf32>
    %11 = tpu.matmul %8, %10, %cst_11 {dimension_numbers = #tpu.dot_dimension_numbers<[1], [0], [0], [1], [0, 0, 1, 1], [], []>} : vector<16x128xf32>, vector<128x128xf32>, vector<16x128xf32> -> vector<16x128xf32>
    %12 = arith.addf %7, %11 : vector<16x128xf32>
    %13 = vector.extract_strided_slice %1 {offsets = [2, 0], sizes = [16, 128], strides = [1, 1]} : vector<18x128xf32> to vector<16x128xf32>
    %c2 = arith.constant 2 : index
    %c0_12 = arith.constant 0 : index
    %c0_13 = arith.constant 0 : index
    %14 = vector.load %arg2[%c2, %c0_12, %c0_13] : memref<3x128x128xf32, #tpu.memory_space<vmem>>, vector<1x128x128xf32>
    %15 = vector.shape_cast %14 : vector<1x128x128xf32> to vector<128x128xf32>
    %cst_14 = arith.constant dense<0.000000e+00> : vector<16x128xf32>
    %16 = tpu.matmul %13, %15, %cst_14 {dimension_numbers = #tpu.dot_dimension_numbers<[1], [0], [0], [1], [0, 0, 1, 1], [], []>} : vector<16x128xf32>, vector<128x128xf32>, vector<16x128xf32> -> vector<16x128xf32>
    %17 = arith.addf %12, %16 : vector<16x128xf32>
    %18 = vector.broadcast %2 : vector<1x128xf32> to vector<16x128xf32>
    %19 = arith.addf %17, %18 : vector<16x128xf32>
    %cst_15 = arith.constant 0.000000e+00 : f32
    %20 = vector.broadcast %cst_15 : f32 to vector<16x128xf32>
    %21 = arith.maximumf %19, %20 : vector<16x128xf32>
    %cst_16 = arith.constant 0.000000e+00 : f32
    %22 = vector.broadcast %cst_16 : f32 to vector<1x128xf32>
    %c0_17 = arith.constant 0 : index
    %c0_18 = arith.constant 0 : index
    %23 = vector.load %arg7[%c0_17, %c0_18] : memref<18x128xf32, #tpu.memory_space<vmem>>, vector<1x128xf32>
    tpu.vector_store %arg7[%c0_17, %c0_18], %22 {strides = array<i32>} : memref<18x128xf32, #tpu.memory_space<vmem>>, vector<1x128xf32>,
    %c17 = arith.constant 17 : index
    %c0_19 = arith.constant 0 : index
    %24 = vector.load %arg7[%c17, %c0_19] : memref<18x128xf32, #tpu.memory_space<vmem>>, vector<1x128xf32>
    tpu.vector_store %arg7[%c17, %c0_19], %22 {strides = array<i32>} : memref<18x128xf32, #tpu.memory_space<vmem>>, vector<1x128xf32>,
    %c1_20 = arith.constant 1 : index
    %c0_21 = arith.constant 0 : index
    %25 = vector.load %arg7[%c1_20, %c0_21] : memref<18x128xf32, #tpu.memory_space<vmem>>, vector<16x128xf32>
    tpu.vector_store %arg7[%c1_20, %c0_21], %21 {strides = array<i32>} : memref<18x128xf32, #tpu.memory_space<vmem>>, vector<16x128xf32>,
    %c0_22 = arith.constant 0 : index
    %c0_23 = arith.constant 0 : index
    %26 = vector.load %arg7[%c0_22, %c0_23] : memref<18x128xf32, #tpu.memory_space<vmem>>, vector<18x128xf32>
    %27 = vector.extract_strided_slice %26 {offsets = [0, 0], sizes = [16, 128], strides = [1, 1]} : vector<18x128xf32> to vector<16x128xf32>
    %c0_24 = arith.constant 0 : index
    %c0_25 = arith.constant 0 : index
    %c0_26 = arith.constant 0 : index
    %28 = vector.load %arg4[%c0_24, %c0_25, %c0_26] : memref<3x128x128xf32, #tpu.memory_space<vmem>>, vector<1x128x128xf32>
    %29 = vector.shape_cast %28 : vector<1x128x128xf32> to vector<128x128xf32>
    %cst_27 = arith.constant dense<0.000000e+00> : vector<16x128xf32>
    %30 = tpu.matmul %27, %29, %cst_27 {dimension_numbers = #tpu.dot_dimension_numbers<[1], [0], [0], [1], [0, 0, 1, 1], [], []>} : vector<16x128xf32>, vector<128x128xf32>, vector<16x128xf32> -> vector<16x128xf32>
    %31 = vector.extract_strided_slice %26 {offsets = [1, 0], sizes = [16, 128], strides = [1, 1]} : vector<18x128xf32> to vector<16x128xf32>
    %c1_28 = arith.constant 1 : index
    %c0_29 = arith.constant 0 : index
    %c0_30 = arith.constant 0 : index
    %32 = vector.load %arg4[%c1_28, %c0_29, %c0_30] : memref<3x128x128xf32, #tpu.memory_space<vmem>>, vector<1x128x128xf32>
    %33 = vector.shape_cast %32 : vector<1x128x128xf32> to vector<128x128xf32>
    %cst_31 = arith.constant dense<0.000000e+00> : vector<16x128xf32>
    %34 = tpu.matmul %31, %33, %cst_31 {dimension_numbers = #tpu.dot_dimension_numbers<[1], [0], [0], [1], [0, 0, 1, 1], [], []>} : vector<16x128xf32>, vector<128x128xf32>, vector<16x128xf32> -> vector<16x128xf32>
    %35 = arith.addf %30, %34 : vector<16x128xf32>
    %36 = vector.extract_strided_slice %26 {offsets = [2, 0], sizes = [16, 128], strides = [1, 1]} : vector<18x128xf32> to vector<16x128xf32>
    %c2_32 = arith.constant 2 : index
    %c0_33 = arith.constant 0 : index
    %c0_34 = arith.constant 0 : index
    %37 = vector.load %arg4[%c2_32, %c0_33, %c0_34] : memref<3x128x128xf32, #tpu.memory_space<vmem>>, vector<1x128x128xf32>
    %38 = vector.shape_cast %37 : vector<1x128x128xf32> to vector<128x128xf32>
    %cst_35 = arith.constant dense<0.000000e+00> : vector<16x128xf32>
    %39 = tpu.matmul %36, %38, %cst_35 {dimension_numbers = #tpu.dot_dimension_numbers<[1], [0], [0], [1], [0, 0, 1, 1], [], []>} : vector<16x128xf32>, vector<128x128xf32>, vector<16x128xf32> -> vector<16x128xf32>
    %40 = arith.addf %35, %39 : vector<16x128xf32>
    %41 = vector.extract_strided_slice %1 {offsets = [1, 0], sizes = [16, 128], strides = [1, 1]} : vector<18x128xf32> to vector<16x128xf32>
    %42 = vector.broadcast %3 : vector<1x128xf32> to vector<16x128xf32>
    %43 = arith.addf %40, %42 : vector<16x128xf32>
    %44 = arith.addf %43, %41 : vector<16x128xf32>
    %cst_36 = arith.constant 0.000000e+00 : f32
    %45 = vector.broadcast %cst_36 : f32 to vector<16x128xf32>
    %46 = arith.maximumf %44, %45 : vector<16x128xf32>
    %c0_37 = arith.constant 0 : index
    %c0_38 = arith.constant 0 : index
    %c0_39 = arith.constant 0 : index
    %47 = vector.load %arg6[%c0_37, %c0_38, %c0_39] : memref<1x16x128xf32, #tpu.memory_space<vmem>>, vector<1x16x128xf32>
    %48 = vector.shape_cast %47 : vector<1x16x128xf32> to vector<16x128xf32>
    %49 = vector.shape_cast %46 : vector<16x128xf32> to vector<1x16x128xf32>
    tpu.vector_store %arg6[%c0_37, %c0_38, %c0_39], %49 {strides = array<i32>} : memref<1x16x128xf32, #tpu.memory_space<vmem>>, vector<1x16x128xf32>,
    return
  }
  func.func @transform_0(%arg0: i32) -> (i32, i32, i32) {
    %c0_i32 = arith.constant 0 : i32
    %c0_i32_0 = arith.constant 0 : i32
    %c0_i32_1 = arith.constant 0 : i32
    return %arg0, %c0_i32, %c0_i32_0 : i32, i32, i32
  }
  func.func @transform_1(%arg0: i32) -> (i32, i32, i32) {
    %c0_i32 = arith.constant 0 : i32
    %c0_i32_0 = arith.constant 0 : i32
    %c0_i32_1 = arith.constant 0 : i32
    %c0_i32_2 = arith.constant 0 : i32
    return %c0_i32, %c0_i32_0, %c0_i32_1 : i32, i32, i32
  }
  func.func @transform_2(%arg0: i32) -> (i32, i32) {
    %c0_i32 = arith.constant 0 : i32
    %c0_i32_0 = arith.constant 0 : i32
    %c0_i32_1 = arith.constant 0 : i32
    return %c0_i32, %c0_i32_0 : i32, i32
  }
  func.func @transform_3(%arg0: i32) -> (i32, i32, i32) {
    %c0_i32 = arith.constant 0 : i32
    %c0_i32_0 = arith.constant 0 : i32
    %c0_i32_1 = arith.constant 0 : i32
    %c0_i32_2 = arith.constant 0 : i32
    return %c0_i32, %c0_i32_0, %c0_i32_1 : i32, i32, i32
  }
  func.func @transform_4(%arg0: i32) -> (i32, i32) {
    %c0_i32 = arith.constant 0 : i32
    %c0_i32_0 = arith.constant 0 : i32
    %c0_i32_1 = arith.constant 0 : i32
    return %c0_i32, %c0_i32_0 : i32, i32
  }
  func.func @transform_5(%arg0: i32) -> (i32, i32, i32) {
    %c0_i32 = arith.constant 0 : i32
    %c0_i32_0 = arith.constant 0 : i32
    %c0_i32_1 = arith.constant 0 : i32
    return %arg0, %c0_i32, %c0_i32_0 : i32, i32, i32
  }
}

</mosaic_0001>

<llo_original>
// kernel: tpu_custom_call.1
$region0: #{tpu_custom_call.1}
  #allocation0 [shape = 'u32[]', space=smem, size = 0x4, offset = 0x4, fixed_abs, tag = 'smem constant byte address 0x4 - core index']
  #allocation1 [shape = 'u32[144,128]{1,0:T(1,128)}', space=vmem, size = 0x12000, scoped, tag = 'internal scratch']
  #allocation2 [shape = 'f32[18,128]{1,0:T(8,128)}', space=vmem, size = 0x3000, scoped, tag = 'scratch operand']
  %s0 = inlined_call_operand.vmem [shape: f32[2,18,128], index: 0, kind: input, shape index: {}]
  %s1 = inlined_call_operand.hbm [shape: f32[3,128,128], index: 1, kind: input, shape index: {}]
  %s2 = inlined_call_operand.vmem [shape: f32[1,128], index: 2, kind: input, shape index: {}]
  %s3 = inlined_call_operand.hbm [shape: f32[3,128,128], index: 3, kind: input, shape index: {}]
  %s4 = inlined_call_operand.vmem [shape: f32[1,128], index: 4, kind: input, shape index: {}]
  %s5 = inlined_call_operand.hbm [shape: f32[2,16,128], index: 5, kind: output, shape index: {}]
  %s6 = sld [smem:[#allocation0]]
  $region61: #{tpu_custom_call.1} parent=0
    _
  %s8 = ssub.s32 1, %s6
  %s9 = scalar_select 0, %s8, %s6
  $region1: #{tpu_custom_call.1} parent=0
    #allocation3 [shape = 'u8[196608]{0}', space=vmem, size = 0x30000, scoped, tag = 'input window, operand 1, single buffered']
    #allocation4 [shape = 's32[2]{0}', space=sflag, size = 0x8, scoped, tag = 'scoped memory for tpu_custom_call.1']
    #allocation5 [shape = 's32[2]{0}', space=sflag, size = 0x8, scoped, tag = 'scoped memory for tpu_custom_call.1']
    #allocation6 [shape = 'u8[196608]{0}', space=vmem, size = 0x30000, scoped, tag = 'input window, operand 3, single buffered']
    #allocation7 [shape = 's32[1]{0}', space=sflag, size = 0x4, scoped, tag = 'scoped memory for tpu_custom_call.1']
    #allocation8 [shape = 'u8[16384]{0}', space=vmem, size = 0x4000, scoped, tag = 'output window, operand 0']
    %10 = vsyncpa [#allocation4], 0
    %11 = vsyncpa [#allocation7], 0
    %12 = vsyncpa [#allocation5], 0
    %s13 = scalar_lea.sflag [#allocation5], 1
    %14 = vsyncpa %s13, 0
    loop: start=0, step=1, limit=4
    $region2: #{tpu_custom_call.1} parent=1 // loop_pre_header
      _
    $region3: #{tpu_custom_call.1} parent=1 // loop_header
      %s16 = sphi 0, %s20
      %p17 = scmp.ge.s32.totalorder %s16, 4
      %s26 = sphi 0, %s28
      %s29 = sphi 0, %s26
      %s30 = sphi 0, %s29
      %s46 = sphi 0, %s30
      %s50 = sphi 0, %s50
      %s52 = sphi 0, %s50
      %s53 = sphi 0, %s52
      %s67 = sphi 0, %s53
      %s71 = sphi 0, %s71
      %s73 = sphi 0, %s71
      %s74 = sphi 0, %s73
      %s88 = sphi 0, %s74
      %s92 = sphi 0, %s92
      %s94 = sphi 0, %s92
      %s95 = sphi 0, %s94
      %s109 = sphi 0, %s95
      %s113 = sphi 0, %s113
      %s115 = sphi 0, %s113
      %s116 = sphi 0, %s115
      %s130 = sphi 0, %s116
      %s136 = sphi 0, %s138
      %s139 = sphi 0, %s136
      %s140 = sphi 0, %s139
      %s156 = sphi 0, %s140
    $region4: #{tpu_custom_call.1} parent=1 // loop_header_branch
      %19 = sbr.rel (%p17) target = $region8
    $region5: #{tpu_custom_call.1} parent=1 // loop_body
      %s21 = ssub.s32 %s16, 1
      %s22 = ssub.s32 %s16, 2
      %s23 = sadd.s32 %s16, 1
      %s24 = ssub.s32 %s16, %s23
      %p25 = scmp.eq.s32.totalorder %s24, 0
      %s27 = sadd.s32 %s26, 1
      %s28 = scalar_select %p25, %s26, %s27
      %p31 = pneg %p25
      %p32 = scmp.eq.s32.totalorder %s16, 1
      %p33 = por %p31, %p32
      %p34 = scmp.ne.s32.totalorder %s26, %s29
      %p35 = scmp.eq.s32.totalorder %s16, 0
      %p36 = por %p34, %p35
      %p37 = scmp.ne.s32.totalorder %s26, %s29
      %p38 = scmp.eq.s32.totalorder %s21, 1
      %p39 = por %p37, %p38
      %p40 = scmp.ne.s32.totalorder %s29, %s30
      %p41 = scmp.eq.s32.totalorder %s21, 0
      %p42 = por %p40, %p41
      %p43 = scmp.ne.s32.totalorder %s29, %s30
      %p44 = scmp.eq.s32.totalorder %s22, 1
      %p45 = por %p43, %p44
      %p47 = scmp.ne.s32.totalorder %s30, %s46
      %p48 = scmp.eq.s32.totalorder %s22, 0
      %p49 = por %p47, %p48
      %s51 = sadd.s32 %s50, 1
      %p54 = scmp.eq.s32.totalorder %s16, 1
      %p55 = scmp.ne.s32.totalorder %s50, %s52
      %p56 = scmp.eq.s32.totalorder %s16, 0
      %p57 = por %p55, %p56
      %p58 = scmp.ne.s32.totalorder %s50, %s52
      %p59 = scmp.eq.s32.totalorder %s21, 1
      %p60 = por %p58, %p59
      %p61 = scmp.ne.s32.totalorder %s52, %s53
      %p62 = scmp.eq.s32.totalorder %s21, 0
      %p63 = por %p61, %p62
      %p64 = scmp.ne.s32.totalorder %s52, %s53
      %p65 = scmp.eq.s32.totalorder %s22, 1
      %p66 = por %p64, %p65
      %p68 = scmp.ne.s32.totalorder %s53, %s67
      %p69 = scmp.eq.s32.totalorder %s22, 0
      %p70 = por %p68, %p69
      %s72 = sadd.s32 %s71, 1
      %p75 = scmp.eq.s32.totalorder %s16, 1
      %p76 = scmp.ne.s32.totalorder %s71, %s73
      %p77 = scmp.eq.s32.totalorder %s16, 0
      %p78 = por %p76, %p77
      %p79 = scmp.ne.s32.totalorder %s71, %s73
      %p80 = scmp.eq.s32.totalorder %s21, 1
      %p81 = por %p79, %p80
      %p82 = scmp.ne.s32.totalorder %s73, %s74
      %p83 = scmp.eq.s32.totalorder %s21, 0
      %p84 = por %p82, %p83
      %p85 = scmp.ne.s32.totalorder %s73, %s74
      %p86 = scmp.eq.s32.totalorder %s22, 1
      %p87 = por %p85, %p86
      %p89 = scmp.ne.s32.totalorder %s74, %s88
      %p90 = scmp.eq.s32.totalorder %s22, 0
      %p91 = por %p89, %p90
      %s93 = sadd.s32 %s92, 1
      %p96 = scmp.eq.s32.totalorder %s16, 1
      %p97 = scmp.ne.s32.totalorder %s92, %s94
      %p98 = scmp.eq.s32.totalorder %s16, 0
      %p99 = por %p97, %p98
      %p100 = scmp.ne.s32.totalorder %s92, %s94
      %p101 = scmp.eq.s32.totalorder %s21, 1
      %p102 = por %p100, %p101
      %p103 = scmp.ne.s32.totalorder %s94, %s95
      %p104 = scmp.eq.s32.totalorder %s21, 0
      %p105 = por %p103, %p104
      %p106 = scmp.ne.s32.totalorder %s94, %s95
      %p107 = scmp.eq.s32.totalorder %s22, 1
      %p108 = por %p106, %p107
      %p110 = scmp.ne.s32.totalorder %s95, %s109
      %p111 = scmp.eq.s32.totalorder %s22, 0
      %p112 = por %p110, %p111
      %s114 = sadd.s32 %s113, 1
      %p117 = scmp.eq.s32.totalorder %s16, 1
      %p118 = scmp.ne.s32.totalorder %s113, %s115
      %p119 = scmp.eq.s32.totalorder %s16, 0
      %p120 = por %p118, %p119
      %p121 = scmp.ne.s32.totalorder %s113, %s115
      %p122 = scmp.eq.s32.totalorder %s21, 1
      %p123 = por %p121, %p122
      %p124 = scmp.ne.s32.totalorder %s115, %s116
      %p125 = scmp.eq.s32.totalorder %s21, 0
      %p126 = por %p124, %p125
      %p127 = scmp.ne.s32.totalorder %s115, %s116
      %p128 = scmp.eq.s32.totalorder %s22, 1
      %p129 = por %p127, %p128
      %p131 = scmp.ne.s32.totalorder %s116, %s130
      %p132 = scmp.eq.s32.totalorder %s22, 0
      %p133 = por %p131, %p132
      %s134 = ssub.s32 %s16, %s23
      %p135 = scmp.eq.s32.totalorder %s134, 0
      %s137 = sadd.s32 %s136, 1
      %s138 = scalar_select %p135, %s136, %s137
      %p141 = pneg %p135
      %p142 = scmp.eq.s32.totalorder %s16, 1
      %p143 = por %p141, %p142
      %p144 = scmp.ne.s32.totalorder %s136, %s139
      %p145 = scmp.eq.s32.totalorder %s16, 0
      %p146 = por %p144, %p145
      %p147 = scmp.ne.s32.totalorder %s136, %s139
      %p148 = scmp.eq.s32.totalorder %s21, 1
      %p149 = por %p147, %p148
      %p150 = scmp.ne.s32.totalorder %s139, %s140
      %p151 = scmp.eq.s32.totalorder %s21, 0
      %p152 = por %p150, %p151
      %p153 = scmp.ne.s32.totalorder %s139, %s140
      %p154 = scmp.eq.s32.totalorder %s22, 1
      %p155 = por %p153, %p154
      %p157 = scmp.ne.s32.totalorder %s140, %s156
      %p158 = scmp.eq.s32.totalorder %s22, 0
      %p159 = por %p157, %p158
      %p160 = scmp.le.s32.totalorder 1, %s16
      %p161 = scmp.lt.s32.totalorder %s16, 3
      %p162 = pnand %p160, %p161
      %p163 = pneg %p162
      // Predicated region
      $region9: #{tpu_custom_call.1} parent=5 // pred_check
        _
      $region10: #{tpu_custom_call.1} parent=5 // pred_check_branch
        %165 = sbr.rel (%p162) target = $region12
      $region11: #{tpu_custom_call.1} parent=5 // pred_region
        %s166 = ssub.s32 %s16, 1
        // Predicated region
        $region13: #{tpu_custom_call.1} parent=11 // pred_check
          %p167 = pneg %p63
        $region14: #{tpu_custom_call.1} parent=11 // pred_check_branch
          %169 = sbr.rel (%p167) target = $region16
        $region15: #{tpu_custom_call.1} parent=11 // pred_region
          %s171 = ssub.s32 6144, 6144
          %172 = vsyncadd [#allocation4], %s171
          %s173 = sshll.u32 [#allocation3], 4
          %s174 = int_to_ptr.vmem [resolvable:$true] %s173
          %179 = dma.hbm_to_vmem [thread:$0]  %s1, 6144, %s174, [#allocation4], 128, 128, 8
        $region16: #{tpu_custom_call.1} parent=11 // pred_fallthru
          _
        // Predicated region
        $region17: #{tpu_custom_call.1} parent=11 // pred_check
          %p180 = pneg %p84
        $region18: #{tpu_custom_call.1} parent=11 // pred_check_branch
          %182 = sbr.rel (%p180) target = $region20
        $region19: #{tpu_custom_call.1} parent=11 // pred_region
          _
        $region20: #{tpu_custom_call.1} parent=11 // pred_fallthru
          _
        // Predicated region
        $region21: #{tpu_custom_call.1} parent=11 // pred_check
          %p183 = pneg %p105
        $region22: #{tpu_custom_call.1} parent=11 // pred_check_branch
          %185 = sbr.rel (%p183) target = $region24
        $region23: #{tpu_custom_call.1} parent=11 // pred_region
          %s187 = ssub.s32 6144, 6144
          %188 = vsyncadd [#allocation7], %s187
          %s189 = sshll.u32 [#allocation6], 4
          %s190 = int_to_ptr.vmem [resolvable:$true] %s189
          %195 = dma.hbm_to_vmem [thread:$0]  %s3, 6144, %s190, [#allocation7], 128, 128, 8
        $region24: #{tpu_custom_call.1} parent=11 // pred_fallthru
          _
        // Predicated region
        $region25: #{tpu_custom_call.1} parent=11 // pred_check
          %p196 = pneg %p126
        $region26: #{tpu_custom_call.1} parent=11 // pred_check_branch
          %198 = sbr.rel (%p196) target = $region28
        $region27: #{tpu_custom_call.1} parent=11 // pred_region
          _
        $region28: #{tpu_custom_call.1} parent=11 // pred_fallthru
          _
      $region12: #{tpu_custom_call.1} parent=5 // pred_fallthru
        _
      %p199 = scmp.lt.s32.totalorder %s16, 2
      // Predicated region
      $region29: #{tpu_custom_call.1} parent=5 // pred_check
        %p200 = pneg %p199
      $region30: #{tpu_custom_call.1} parent=5 // pred_check_branch
        %202 = sbr.rel (%p200) target = $region32
      $region31: #{tpu_custom_call.1} parent=5 // pred_region
        // Predicated region
        $region33: #{tpu_custom_call.1} parent=31 // pred_check
          %p203 = pneg %p36
        $region34: #{tpu_custom_call.1} parent=31 // pred_check_branch
          %205 = sbr.rel (%p203) target = $region36
        $region35: #{tpu_custom_call.1} parent=31 // pred_region
          %p206 = scmp.lt.s32.totalorder %s16, 1
          %s207 = scalar_select %p206, %s16, 1
          %s208 = smul.addr %s207, 3
          %s209 = smul.addr %s208, 8
          %s210 = scalar_lea.vmem %s0, %s209
        $region36: #{tpu_custom_call.1} parent=31 // pred_fallthru
          _
      $region32: #{tpu_custom_call.1} parent=5 // pred_fallthru
        _
      %p211 = scmp.le.s32.totalorder 1, %s16
      %p212 = scmp.lt.s32.totalorder %s16, 3
      %p213 = pnand %p211, %p212
      %p214 = pneg %p213
      // Predicated region
      $region37: #{tpu_custom_call.1} parent=5 // pred_check
        _
      $region38: #{tpu_custom_call.1} parent=5 // pred_check_branch
        %216 = sbr.rel (%p213) target = $region40
      $region39: #{tpu_custom_call.1} parent=5 // pred_region
        %s217 = ssub.s32 %s16, 1
        // Predicated region
        $region41: #{tpu_custom_call.1} parent=39 // pred_check
          %p218 = pneg %p63
        $region42: #{tpu_custom_call.1} parent=39 // pred_check_branch
          %220 = sbr.rel (%p218) target = $region44
        $region43: #{tpu_custom_call.1} parent=39 // pred_region
          %221 = dma.done [#allocation4], 6144
        $region44: #{tpu_custom_call.1} parent=39 // pred_fallthru
          _
        // Predicated region
        $region45: #{tpu_custom_call.1} parent=39 // pred_check
          %p222 = pneg %p105
        $region46: #{tpu_custom_call.1} parent=39 // pred_check_branch
          %224 = sbr.rel (%p222) target = $region48
        $region47: #{tpu_custom_call.1} parent=39 // pred_region
          %225 = dma.done [#allocation7], 6144
        $region48: #{tpu_custom_call.1} parent=39 // pred_fallthru
          _
        %p226 = scmp.lt.s32.totalorder %s21, 1
        %s227 = scalar_select %p226, %s21, 1
        %s228 = smul.addr %s227, 3
        %s229 = smul.addr %s228, 8
        %s230 = scalar_lea.vmem %s0, %s229
        %p231 = pneg %p42
        %p232 = pneg %p39
        %p233 = pneg %p63
        %p234 = pneg %p60
        %p235 = pneg %p84
        %p236 = pneg %p81
        %p237 = pneg %p105
        %p238 = pneg %p102
        %p239 = pneg %p126
        %p240 = pneg %p123
        %p241 = pneg %p152
        %p242 = pneg %p149
        %s243 = sand.u32 %s139, 1
        %s244 = scalar_lea.sflag [#allocation5], %s243
        %s245 = sand.u32 %s139, 1
        %s246 = smul.addr %s245, 16
        %s247 = scalar_lea.vmem [#allocation8], %s246
        %p248 = scmp.lt.s32.totalorder %s21, 1
        %s249 = scalar_select %p248, %s21, 1
        %s250 = smul.addr %s249, 3
        %s251 = smul.addr %s250, 8
        %s252 = scalar_lea.vmem %s0, %s251
        %v253 = vld [vmem:[%s252] sm:$0xff]
        %v254 = vld [vmem:[%s252 + $0x8] sm:$0xff]
        %v255 = vld [vmem:[%s252 + $0x10] sm:$0x3]
        %v256 = vld [vmem:[%s2] sm:$0x1]
        %v257 = vld [vmem:[%s4] sm:$0x1]
        %v258 = vld [vmem:[#allocation3] sm:$0xff]
        %v259 = vld [vmem:[#allocation3 + $0x8] sm:$0xff]
        %v260 = vld [vmem:[#allocation3 + $0x10] sm:$0xff]
        %v261 = vld [vmem:[#allocation3 + $0x18] sm:$0xff]
        %v262 = vld [vmem:[#allocation3 + $0x20] sm:$0xff]
        %v263 = vld [vmem:[#allocation3 + $0x28] sm:$0xff]
        %v264 = vld [vmem:[#allocation3 + $0x30] sm:$0xff]
        %v265 = vld [vmem:[#allocation3 + $0x38] sm:$0xff]
        %v266 = vld [vmem:[#allocation3 + $0x40] sm:$0xff]
        %v267 = vld [vmem:[#allocation3 + $0x48] sm:$0xff]
        %v268 = vld [vmem:[#allocation3 + $0x50] sm:$0xff]
        %v269 = vld [vmem:[#allocation3 + $0x58] sm:$0xff]
        %v270 = vld [vmem:[#allocation3 + $0x60] sm:$0xff]
        %v271 = vld [vmem:[#allocation3 + $0x68] sm:$0xff]
        %v272 = vld [vmem:[#allocation3 + $0x70] sm:$0xff]
        %v273 = vld [vmem:[#allocation3 + $0x78] sm:$0xff]
        %s274 = scalar_lea.vmem [#allocation3], 128
        %v275 = vld [vmem:[%s274] sm:$0xff]
        %v276 = vld [vmem:[%s274 + $0x8] sm:$0xff]
        %v277 = vld [vmem:[%s274 + $0x10] sm:$0xff]
        %v278 = vld [vmem:[%s274 + $0x18] sm:$0xff]
        %v279 = vld [vmem:[%s274 + $0x20] sm:$0xff]
        %v280 = vld [vmem:[%s274 + $0x28] sm:$0xff]
        %v281 = vld [vmem:[%s274 + $0x30] sm:$0xff]
        %v282 = vld [vmem:[%s274 + $0x38] sm:$0xff]
        %v283 = vld [vmem:[%s274 + $0x40] sm:$0xff]
        %v284 = vld [vmem:[%s274 + $0x48] sm:$0xff]
        %v285 = vld [vmem:[%s274 + $0x50] sm:$0xff]
        %v286 = vld [vmem:[%s274 + $0x58] sm:$0xff]
        %v287 = vld [vmem:[%s274 + $0x60] sm:$0xff]
        %v288 = vld [vmem:[%s274 + $0x68] sm:$0xff]
        %v289 = vld [vmem:[%s274 + $0x70] sm:$0xff]
        %v290 = vld [vmem:[%s274 + $0x78] sm:$0xff]
        %vm294 = vcmask 1046528
        %v295 = vrot.slane %v253, 1
        %v296 = vrot.slane %v254, 1
        %v297 = vsel %vm294, %v295, %v296
        %v298 = vrot.slane %v255, 1
        %v299 = vsel %vm294, %v296, %v298
        %302 = vmatprep.subr.mxu0 0.0
        %303 = vmatpush1.msra.mxu0 %v290
        %304 = vmatprep.subr.mxu0 0.0
        %305 = vmatpush1.msra.mxu0 %v289
        %306 = vmatprep.subr.mxu0 0.0
        %307 = vmatpush1.msra.mxu0 %v288
        %308 = vmatprep.subr.mxu0 0.0
        %309 = vmatpush1.msra.mxu0 %v287
        %310 = vmatprep.subr.mxu0 0.0
        %311 = vmatpush1.msra.mxu0 %v286
        %312 = vmatprep.subr.mxu0 0.0
        %313 = vmatpush1.msra.mxu0 %v285
        %314 = vmatprep.subr.mxu0 0.0
        %315 = vmatpush1.msra.mxu0 %v284
        %316 = vmatprep.subr.mxu0 0.0
        %317 = vmatpush1.msra.mxu0 %v283
        %318 = vmatprep.subr.mxu0 0.0
        %319 = vmatpush1.msra.mxu0 %v282
        %320 = vmatprep.subr.mxu0 0.0
        %321 = vmatpush1.msra.mxu0 %v281
        %322 = vmatprep.subr.mxu0 0.0
        %323 = vmatpush1.msra.mxu0 %v280
        %324 = vmatprep.subr.mxu0 0.0
        %325 = vmatpush1.msra.mxu0 %v279
        %326 = vmatprep.subr.mxu0 0.0
        %327 = vmatpush1.msra.mxu0 %v278
        %328 = vmatprep.subr.mxu0 0.0
        %329 = vmatpush1.msra.mxu0 %v277
        %330 = vmatprep.subr.mxu0 0.0
        %331 = vmatpush1.msra.mxu0 %v276
        %332 = vmatprep.subr.mxu0 0.0
        %333 = vmatpush1.msra.mxu0 %v275
        %334 = vmatprep.subr.mxu0 0.0
        %335 = vmatpush2.msra.mxu0 0.0
        %336 = vmatprep.subr.mxu0 0.0
        %337 = vmatpush2.msra.mxu0 0.0
        %338 = vmatprep.subr.mxu0 0.0
        %339 = vmatpush2.msra.mxu0 0.0
        %340 = vmatprep.subr.mxu0 0.0
        %341 = vmatpush2.msra.mxu0 0.0
        %342 = vmatprep.subr.mxu0 0.0
        %343 = vmatpush2.msra.mxu0 0.0
        %344 = vmatprep.subr.mxu0 0.0
        %345 = vmatpush2.msra.mxu0 0.0
        %346 = vmatprep.subr.mxu0 0.0
        %347 = vmatpush2.msra.mxu0 0.0
        %348 = vmatprep.subr.mxu0 0.0
        %349 = vmatpush2.msra.mxu0 0.0
        %350 = vmatprep.subr.mxu0 0.0
        %351 = vmatpush2.msra.mxu0 0.0
        %352 = vmatprep.subr.mxu0 0.0
        %353 = vmatpush2.msra.mxu0 0.0
        %354 = vmatprep.subr.mxu0 0.0
        %355 = vmatpush2.msra.mxu0 0.0
        %356 = vmatprep.subr.mxu0 0.0
        %357 = vmatpush2.msra.mxu0 0.0
        %358 = vmatprep.subr.mxu0 0.0
        %359 = vmatpush2.msra.mxu0 0.0
        %360 = vmatprep.subr.mxu0 0.0
        %361 = vmatpush2.msra.mxu0 0.0
        %362 = vmatprep.subr.mxu0 0.0
        %363 = vmatpush2.msra.mxu0 0.0
        %364 = vmatprep.subr.mxu0 0.0
        %365 = vmatpush2.msra.mxu0 0.0
        %366 = vmatprep.mubr.f32.mxu0 0.0
        %367 = vmatmul.mubr.f32.gmra.mxu0 %v297
        %v368 = vpop.f32.mrf.mxu0
        %v369 = vadd.f32 0.0, %v368
        %v370 = vpop.f32.mrf.mxu0
        %371 = vmatprep.mubr.f32.mxu0 0.0
        %372 = vmatmul.mubr.f32.gmra.mxu0 %v299
        %v373 = vpop.f32.mrf.mxu0
        %v374 = vadd.f32 0.0, %v373
        %v375 = vpop.f32.mrf.mxu0
        %376 = vdwg.mxu0
        %377 = vmatprep.subr.mxu0 0.0
        %378 = vmatpush1.msra.mxu0 %v273
        %379 = vmatprep.subr.mxu0 0.0
        %380 = vmatpush1.msra.mxu0 %v272
        %381 = vmatprep.subr.mxu0 0.0
        %382 = vmatpush1.msra.mxu0 %v271
        %383 = vmatprep.subr.mxu0 0.0
        %384 = vmatpush1.msra.mxu0 %v270
        %385 = vmatprep.subr.mxu0 0.0
        %386 = vmatpush1.msra.mxu0 %v269
        %387 = vmatprep.subr.mxu0 0.0
        %388 = vmatpush1.msra.mxu0 %v268
        %389 = vmatprep.subr.mxu0 0.0
        %390 = vmatpush1.msra.mxu0 %v267
        %391 = vmatprep.subr.mxu0 0.0
        %392 = vmatpush1.msra.mxu0 %v266
        %393 = vmatprep.subr.mxu0 0.0
        %394 = vmatpush1.msra.mxu0 %v265
        %395 = vmatprep.subr.mxu0 0.0
        %396 = vmatpush1.msra.mxu0 %v264
        %397 = vmatprep.subr.mxu0 0.0
        %398 = vmatpush1.msra.mxu0 %v263
        %399 = vmatprep.subr.mxu0 0.0
        %400 = vmatpush1.msra.mxu0 %v262
        %401 = vmatprep.subr.mxu0 0.0
        %402 = vmatpush1.msra.mxu0 %v261
        %403 = vmatprep.subr.mxu0 0.0
        %404 = vmatpush1.msra.mxu0 %v260
        %405 = vmatprep.subr.mxu0 0.0
        %406 = vmatpush1.msra.mxu0 %v259
        %407 = vmatprep.subr.mxu0 0.0
        %408 = vmatpush1.msra.mxu0 %v258
        %409 = vmatprep.subr.mxu0 0.0
        %410 = vmatpush2.msra.mxu0 0.0
        %411 = vmatprep.subr.mxu0 0.0
        %412 = vmatpush2.msra.mxu0 0.0
        %413 = vmatprep.subr.mxu0 0.0
        %414 = vmatpush2.msra.mxu0 0.0
        %415 = vmatprep.subr.mxu0 0.0
        %416 = vmatpush2.msra.mxu0 0.0
        %417 = vmatprep.subr.mxu0 0.0
        %418 = vmatpush2.msra.mxu0 0.0
        %419 = vmatprep.subr.mxu0 0.0
        %420 = vmatpush2.msra.mxu0 0.0
        %421 = vmatprep.subr.mxu0 0.0
        %422 = vmatpush2.msra.mxu0 0.0
        %423 = vmatprep.subr.mxu0 0.0
        %424 = vmatpush2.msra.mxu0 0.0
        %425 = vmatprep.subr.mxu0 0.0
        %426 = vmatpush2.msra.mxu0 0.0
        %427 = vmatprep.subr.mxu0 0.0
        %428 = vmatpush2.msra.mxu0 0.0
        %429 = vmatprep.subr.mxu0 0.0
        %430 = vmatpush2.msra.mxu0 0.0
        %431 = vmatprep.subr.mxu0 0.0
        %432 = vmatpush2.msra.mxu0 0.0
        %433 = vmatprep.subr.mxu0 0.0
        %434 = vmatpush2.msra.mxu0 0.0
        %435 = vmatprep.subr.mxu0 0.0
        %436 = vmatpush2.msra.mxu0 0.0
        %437 = vmatprep.subr.mxu0 0.0
        %438 = vmatpush2.msra.mxu0 0.0
        %439 = vmatprep.subr.mxu0 0.0
        %440 = vmatpush2.msra.mxu0 0.0
        %441 = vmatprep.mubr.f32.mxu0 0.0
        %442 = vmatmul.mubr.f32.gmra.mxu0 %v253
        %v443 = vpop.f32.mrf.mxu0
        %v444 = vadd.f32 %v369, %v443
        %v445 = vpop.f32.mrf.mxu0
        %446 = vmatprep.mubr.f32.mxu0 0.0
        %447 = vmatmul.mubr.f32.gmra.mxu0 %v254
        %v448 = vpop.f32.mrf.mxu0
        %v449 = vadd.f32 %v374, %v448
        %v450 = vpop.f32.mrf.mxu0
        %451 = vdwg.mxu0
        %s452 = scalar_lea.vmem [#allocation3], 256
        %v453 = vld [vmem:[%s452] sm:$0xff]
        %v454 = vld [vmem:[%s452 + $0x8] sm:$0xff]
        %v455 = vld [vmem:[%s452 + $0x10] sm:$0xff]
        %v456 = vld [vmem:[%s452 + $0x18] sm:$0xff]
        %v457 = vld [vmem:[%s452 + $0x20] sm:$0xff]
        %v458 = vld [vmem:[%s452 + $0x28] sm:$0xff]
        %v459 = vld [vmem:[%s452 + $0x30] sm:$0xff]
        %v460 = vld [vmem:[%s452 + $0x38] sm:$0xff]
        %v461 = vld [vmem:[%s452 + $0x40] sm:$0xff]
        %v462 = vld [vmem:[%s452 + $0x48] sm:$0xff]
        %v463 = vld [vmem:[%s452 + $0x50] sm:$0xff]
        %v464 = vld [vmem:[%s452 + $0x58] sm:$0xff]
        %v465 = vld [vmem:[%s452 + $0x60] sm:$0xff]
        %v466 = vld [vmem:[%s452 + $0x68] sm:$0xff]
        %v467 = vld [vmem:[%s452 + $0x70] sm:$0xff]
        %v468 = vld [vmem:[%s452 + $0x78] sm:$0xff]
        %vm469 = vcmask 1045504
        %v470 = vrot.slane %v253, 2
        %v471 = vrot.slane %v254, 2
        %v472 = vsel %vm469, %v470, %v471
        %v473 = vrot.slane %v255, 2
        %v474 = vsel %vm469, %v471, %v473
        %477 = vmatprep.subr.mxu0 0.0
        %478 = vmatpush1.msra.mxu0 %v468
        %479 = vmatprep.subr.mxu0 0.0
        %480 = vmatpush1.msra.mxu0 %v467
        %481 = vmatprep.subr.mxu0 0.0
        %482 = vmatpush1.msra.mxu0 %v466
        %483 = vmatprep.subr.mxu0 0.0
        %484 = vmatpush1.msra.mxu0 %v465
        %485 = vmatprep.subr.mxu0 0.0
        %486 = vmatpush1.msra.mxu0 %v464
        %487 = vmatprep.subr.mxu0 0.0
        %488 = vmatpush1.msra.mxu0 %v463
        %489 = vmatprep.subr.mxu0 0.0
        %490 = vmatpush1.msra.mxu0 %v462
        %491 = vmatprep.subr.mxu0 0.0
        %492 = vmatpush1.msra.mxu0 %v461
        %493 = vmatprep.subr.mxu0 0.0
        %494 = vmatpush1.msra.mxu0 %v460
        %495 = vmatprep.subr.mxu0 0.0
        %496 = vmatpush1.msra.mxu0 %v459
        %497 = vmatprep.subr.mxu0 0.0
        %498 = vmatpush1.msra.mxu0 %v458
        %499 = vmatprep.subr.mxu0 0.0
        %500 = vmatpush1.msra.mxu0 %v457
        %501 = vmatprep.subr.mxu0 0.0
        %502 = vmatpush1.msra.mxu0 %v456
        %503 = vmatprep.subr.mxu0 0.0
        %504 = vmatpush1.msra.mxu0 %v455
        %505 = vmatprep.subr.mxu0 0.0
        %506 = vmatpush1.msra.mxu0 %v454
        %507 = vmatprep.subr.mxu0 0.0
        %508 = vmatpush1.msra.mxu0 %v453
        %509 = vmatprep.subr.mxu0 0.0
        %510 = vmatpush2.msra.mxu0 0.0
        %511 = vmatprep.subr.mxu0 0.0
        %512 = vmatpush2.msra.mxu0 0.0
        %513 = vmatprep.subr.mxu0 0.0
        %514 = vmatpush2.msra.mxu0 0.0
        %515 = vmatprep.subr.mxu0 0.0
        %516 = vmatpush2.msra.mxu0 0.0
        %517 = vmatprep.subr.mxu0 0.0
        %518 = vmatpush2.msra.mxu0 0.0
        %519 = vmatprep.subr.mxu0 0.0
        %520 = vmatpush2.msra.mxu0 0.0
        %521 = vmatprep.subr.mxu0 0.0
        %522 = vmatpush2.msra.mxu0 0.0
        %523 = vmatprep.subr.mxu0 0.0
        %524 = vmatpush2.msra.mxu0 0.0
        %525 = vmatprep.subr.mxu0 0.0
        %526 = vmatpush2.msra.mxu0 0.0
        %527 = vmatprep.subr.mxu0 0.0
        %528 = vmatpush2.msra.mxu0 0.0
        %529 = vmatprep.subr.mxu0 0.0
        %530 = vmatpush2.msra.mxu0 0.0
        %531 = vmatprep.subr.mxu0 0.0
        %532 = vmatpush2.msra.mxu0 0.0
        %533 = vmatprep.subr.mxu0 0.0
        %534 = vmatpush2.msra.mxu0 0.0
        %535 = vmatprep.subr.mxu0 0.0
        %536 = vmatpush2.msra.mxu0 0.0
        %537 = vmatprep.subr.mxu0 0.0
        %538 = vmatpush2.msra.mxu0 0.0
        %539 = vmatprep.subr.mxu0 0.0
        %540 = vmatpush2.msra.mxu0 0.0
        %541 = vmatprep.mubr.f32.mxu0 0.0
        %542 = vmatmul.mubr.f32.gmra.mxu0 %v472
        %v543 = vpop.f32.mrf.mxu0
        %v544 = vadd.f32 0.0, %v543
        %v545 = vpop.f32.mrf.mxu0
        %546 = vmatprep.mubr.f32.mxu0 0.0
        %547 = vmatmul.mubr.f32.gmra.mxu0 %v474
        %v548 = vpop.f32.mrf.mxu0
        %v549 = vadd.f32 0.0, %v548
        %v550 = vpop.f32.mrf.mxu0
        %551 = vdwg.mxu0
        %v552 = vadd.f32 %v444, %v544
        %v553 = vadd.f32 %v449, %v549
        %v555 = vlaneseq
        %v556 = vshrl.u32 %v555, 7
        %v557 = vsub.s32 0, %v556
        %v558 = vrot.slane %v256, %v557
        %v560 = vadd.f32 %v552, %v558
        %v561 = vadd.f32 %v553, %v558
        %v562 = vmax.f32 %v560, 0.0
        %v563 = vmax.f32 %v561, 0.0
        %564 = vst [vmem:[#allocation2] sm:$0x1] 0.0
        %565 = vst [vmem:[#allocation2 + $0x11] sm:$0x1] 0.0
        %566 = vst [vmem:[#allocation2 + $0x1] sm:$0xff] %v562
        %567 = vst [vmem:[#allocation2 + $0x9] sm:$0xff] %v563
        %v568 = vld [vmem:[#allocation2] sm:$0xff]
        %v569 = vld [vmem:[#allocation2 + $0x8] sm:$0xff]
        %v570 = vld [vmem:[#allocation2 + $0x10] sm:$0x3]
        %v571 = vld [vmem:[#allocation6] sm:$0xff]
        %v572 = vld [vmem:[#allocation6 + $0x8] sm:$0xff]
        %v573 = vld [vmem:[#allocation6 + $0x10] sm:$0xff]
        %v574 = vld [vmem:[#allocation6 + $0x18] sm:$0xff]
        %v575 = vld [vmem:[#allocation6 + $0x20] sm:$0xff]
        %v576 = vld [vmem:[#allocation6 + $0x28] sm:$0xff]
        %v577 = vld [vmem:[#allocation6 + $0x30] sm:$0xff]
        %v578 = vld [vmem:[#allocation6 + $0x38] sm:$0xff]
        %v579 = vld [vmem:[#allocation6 + $0x40] sm:$0xff]
        %v580 = vld [vmem:[#allocation6 + $0x48] sm:$0xff]
        %v581 = vld [vmem:[#allocation6 + $0x50] sm:$0xff]
        %v582 = vld [vmem:[#allocation6 + $0x58] sm:$0xff]
        %v583 = vld [vmem:[#allocation6 + $0x60] sm:$0xff]
        %v584 = vld [vmem:[#allocation6 + $0x68] sm:$0xff]
        %v585 = vld [vmem:[#allocation6 + $0x70] sm:$0xff]
        %v586 = vld [vmem:[#allocation6 + $0x78] sm:$0xff]
        %s587 = scalar_lea.vmem [#allocation6], 128
        %v588 = vld [vmem:[%s587] sm:$0xff]
        %v589 = vld [vmem:[%s587 + $0x8] sm:$0xff]
        %v590 = vld [vmem:[%s587 + $0x10] sm:$0xff]
        %v591 = vld [vmem:[%s587 + $0x18] sm:$0xff]
        %v592 = vld [vmem:[%s587 + $0x20] sm:$0xff]
        %v593 = vld [vmem:[%s587 + $0x28] sm:$0xff]
        %v594 = vld [vmem:[%s587 + $0x30] sm:$0xff]
        %v595 = vld [vmem:[%s587 + $0x38] sm:$0xff]
        %v596 = vld [vmem:[%s587 + $0x40] sm:$0xff]
        %v597 = vld [vmem:[%s587 + $0x48] sm:$0xff]
        %v598 = vld [vmem:[%s587 + $0x50] sm:$0xff]
        %v599 = vld [vmem:[%s587 + $0x58] sm:$0xff]
        %v600 = vld [vmem:[%s587 + $0x60] sm:$0xff]
        %v601 = vld [vmem:[%s587 + $0x68] sm:$0xff]
        %v602 = vld [vmem:[%s587 + $0x70] sm:$0xff]
        %v603 = vld [vmem:[%s587 + $0x78] sm:$0xff]
        %v607 = vrot.slane %v568, 1
        %v608 = vrot.slane %v569, 1
        %v609 = vsel %vm294, %v607, %v608
        %v610 = vrot.slane %v570, 1
        %v611 = vsel %vm294, %v608, %v610
        %614 = vmatprep.subr.mxu0 0.0
        %615 = vmatpush1.msra.mxu0 %v603
        %616 = vmatprep.subr.mxu0 0.0
        %617 = vmatpush1.msra.mxu0 %v602
        %618 = vmatprep.subr.mxu0 0.0
        %619 = vmatpush1.msra.mxu0 %v601
        %620 = vmatprep.subr.mxu0 0.0
        %621 = vmatpush1.msra.mxu0 %v600
        %622 = vmatprep.subr.mxu0 0.0
        %623 = vmatpush1.msra.mxu0 %v599
        %624 = vmatprep.subr.mxu0 0.0
        %625 = vmatpush1.msra.mxu0 %v598
        %626 = vmatprep.subr.mxu0 0.0
        %627 = vmatpush1.msra.mxu0 %v597
        %628 = vmatprep.subr.mxu0 0.0
        %629 = vmatpush1.msra.mxu0 %v596
        %630 = vmatprep.subr.mxu0 0.0
        %631 = vmatpush1.msra.mxu0 %v595
        %632 = vmatprep.subr.mxu0 0.0
        %633 = vmatpush1.msra.mxu0 %v594
        %634 = vmatprep.subr.mxu0 0.0
        %635 = vmatpush1.msra.mxu0 %v593
        %636 = vmatprep.subr.mxu0 0.0
        %637 = vmatpush1.msra.mxu0 %v592
        %638 = vmatprep.subr.mxu0 0.0
        %639 = vmatpush1.msra.mxu0 %v591
        %640 = vmatprep.subr.mxu0 0.0
        %641 = vmatpush1.msra.mxu0 %v590
        %642 = vmatprep.subr.mxu0 0.0
        %643 = vmatpush1.msra.mxu0 %v589
        %644 = vmatprep.subr.mxu0 0.0
        %645 = vmatpush1.msra.mxu0 %v588
        %646 = vmatprep.subr.mxu0 0.0
        %647 = vmatpush2.msra.mxu0 0.0
        %648 = vmatprep.subr.mxu0 0.0
        %649 = vmatpush2.msra.mxu0 0.0
        %650 = vmatprep.subr.mxu0 0.0
        %651 = vmatpush2.msra.mxu0 0.0
        %652 = vmatprep.subr.mxu0 0.0
        %653 = vmatpush2.msra.mxu0 0.0
        %654 = vmatprep.subr.mxu0 0.0
        %655 = vmatpush2.msra.mxu0 0.0
        %656 = vmatprep.subr.mxu0 0.0
        %657 = vmatpush2.msra.mxu0 0.0
        %658 = vmatprep.subr.mxu0 0.0
        %659 = vmatpush2.msra.mxu0 0.0
        %660 = vmatprep.subr.mxu0 0.0
        %661 = vmatpush2.msra.mxu0 0.0
        %662 = vmatprep.subr.mxu0 0.0
        %663 = vmatpush2.msra.mxu0 0.0
        %664 = vmatprep.subr.mxu0 0.0
        %665 = vmatpush2.msra.mxu0 0.0
        %666 = vmatprep.subr.mxu0 0.0
        %667 = vmatpush2.msra.mxu0 0.0
        %668 = vmatprep.subr.mxu0 0.0
        %669 = vmatpush2.msra.mxu0 0.0
        %670 = vmatprep.subr.mxu0 0.0
        %671 = vmatpush2.msra.mxu0 0.0
        %672 = vmatprep.subr.mxu0 0.0
        %673 = vmatpush2.msra.mxu0 0.0
        %674 = vmatprep.subr.mxu0 0.0
        %675 = vmatpush2.msra.mxu0 0.0
        %676 = vmatprep.subr.mxu0 0.0
        %677 = vmatpush2.msra.mxu0 0.0
        %678 = vmatprep.mubr.f32.mxu0 0.0
        %679 = vmatmul.mubr.f32.gmra.mxu0 %v609
        %v680 = vpop.f32.mrf.mxu0
        %v681 = vadd.f32 0.0, %v680
        %v682 = vpop.f32.mrf.mxu0
        %683 = vmatprep.mubr.f32.mxu0 0.0
        %684 = vmatmul.mubr.f32.gmra.mxu0 %v611
        %v685 = vpop.f32.mrf.mxu0
        %v686 = vadd.f32 0.0, %v685
        %v687 = vpop.f32.mrf.mxu0
        %688 = vdwg.mxu0
        %689 = vmatprep.subr.mxu0 0.0
        %690 = vmatpush1.msra.mxu0 %v586
        %691 = vmatprep.subr.mxu0 0.0
        %692 = vmatpush1.msra.mxu0 %v585
        %693 = vmatprep.subr.mxu0 0.0
        %694 = vmatpush1.msra.mxu0 %v584
        %695 = vmatprep.subr.mxu0 0.0
        %696 = vmatpush1.msra.mxu0 %v583
        %697 = vmatprep.subr.mxu0 0.0
        %698 = vmatpush1.msra.mxu0 %v582
        %699 = vmatprep.subr.mxu0 0.0
        %700 = vmatpush1.msra.mxu0 %v581
        %701 = vmatprep.subr.mxu0 0.0
        %702 = vmatpush1.msra.mxu0 %v580
        %703 = vmatprep.subr.mxu0 0.0
        %704 = vmatpush1.msra.mxu0 %v579
        %705 = vmatprep.subr.mxu0 0.0
        %706 = vmatpush1.msra.mxu0 %v578
        %707 = vmatprep.subr.mxu0 0.0
        %708 = vmatpush1.msra.mxu0 %v577
        %709 = vmatprep.subr.mxu0 0.0
        %710 = vmatpush1.msra.mxu0 %v576
        %711 = vmatprep.subr.mxu0 0.0
        %712 = vmatpush1.msra.mxu0 %v575
        %713 = vmatprep.subr.mxu0 0.0
        %714 = vmatpush1.msra.mxu0 %v574
        %715 = vmatprep.subr.mxu0 0.0
        %716 = vmatpush1.msra.mxu0 %v573
        %717 = vmatprep.subr.mxu0 0.0
        %718 = vmatpush1.msra.mxu0 %v572
        %719 = vmatprep.subr.mxu0 0.0
        %720 = vmatpush1.msra.mxu0 %v571
        %721 = vmatprep.subr.mxu0 0.0
        %722 = vmatpush2.msra.mxu0 0.0
        %723 = vmatprep.subr.mxu0 0.0
        %724 = vmatpush2.msra.mxu0 0.0
        %725 = vmatprep.subr.mxu0 0.0
        %726 = vmatpush2.msra.mxu0 0.0
        %727 = vmatprep.subr.mxu0 0.0
        %728 = vmatpush2.msra.mxu0 0.0
        %729 = vmatprep.subr.mxu0 0.0
        %730 = vmatpush2.msra.mxu0 0.0
        %731 = vmatprep.subr.mxu0 0.0
        %732 = vmatpush2.msra.mxu0 0.0
        %733 = vmatprep.subr.mxu0 0.0
        %734 = vmatpush2.msra.mxu0 0.0
        %735 = vmatprep.subr.mxu0 0.0
        %736 = vmatpush2.msra.mxu0 0.0
        %737 = vmatprep.subr.mxu0 0.0
        %738 = vmatpush2.msra.mxu0 0.0
        %739 = vmatprep.subr.mxu0 0.0
        %740 = vmatpush2.msra.mxu0 0.0
        %741 = vmatprep.subr.mxu0 0.0
        %742 = vmatpush2.msra.mxu0 0.0
        %743 = vmatprep.subr.mxu0 0.0
        %744 = vmatpush2.msra.mxu0 0.0
        %745 = vmatprep.subr.mxu0 0.0
        %746 = vmatpush2.msra.mxu0 0.0
        %747 = vmatprep.subr.mxu0 0.0
        %748 = vmatpush2.msra.mxu0 0.0
        %749 = vmatprep.subr.mxu0 0.0
        %750 = vmatpush2.msra.mxu0 0.0
        %751 = vmatprep.subr.mxu0 0.0
        %752 = vmatpush2.msra.mxu0 0.0
        %753 = vmatprep.mubr.f32.mxu0 0.0
        %754 = vmatmul.mubr.f32.gmra.mxu0 %v568
        %v755 = vpop.f32.mrf.mxu0
        %v756 = vadd.f32 %v681, %v755
        %v757 = vpop.f32.mrf.mxu0
        %758 = vmatprep.mubr.f32.mxu0 0.0
        %759 = vmatmul.mubr.f32.gmra.mxu0 %v569
        %v760 = vpop.f32.mrf.mxu0
        %v761 = vadd.f32 %v686, %v760
        %v762 = vpop.f32.mrf.mxu0
        %763 = vdwg.mxu0
        %s764 = scalar_lea.vmem [#allocation6], 256
        %v765 = vld [vmem:[%s764] sm:$0xff]
        %v766 = vld [vmem:[%s764 + $0x8] sm:$0xff]
        %v767 = vld [vmem:[%s764 + $0x10] sm:$0xff]
        %v768 = vld [vmem:[%s764 + $0x18] sm:$0xff]
        %v769 = vld [vmem:[%s764 + $0x20] sm:$0xff]
        %v770 = vld [vmem:[%s764 + $0x28] sm:$0xff]
        %v771 = vld [vmem:[%s764 + $0x30] sm:$0xff]
        %v772 = vld [vmem:[%s764 + $0x38] sm:$0xff]
        %v773 = vld [vmem:[%s764 + $0x40] sm:$0xff]
        %v774 = vld [vmem:[%s764 + $0x48] sm:$0xff]
        %v775 = vld [vmem:[%s764 + $0x50] sm:$0xff]
        %v776 = vld [vmem:[%s764 + $0x58] sm:$0xff]
        %v777 = vld [vmem:[%s764 + $0x60] sm:$0xff]
        %v778 = vld [vmem:[%s764 + $0x68] sm:$0xff]
        %v779 = vld [vmem:[%s764 + $0x70] sm:$0xff]
        %v780 = vld [vmem:[%s764 + $0x78] sm:$0xff]
        %v781 = vrot.slane %v568, 2
        %v782 = vrot.slane %v569, 2
        %v783 = vsel %vm469, %v781, %v782
        %v784 = vrot.slane %v570, 2
        %v785 = vsel %vm469, %v782, %v784
        %788 = vmatprep.subr.mxu0 0.0
        %789 = vmatpush1.msra.mxu0 %v780
        %790 = vmatprep.subr.mxu0 0.0
        %791 = vmatpush1.msra.mxu0 %v779
        %792 = vmatprep.subr.mxu0 0.0
        %793 = vmatpush1.msra.mxu0 %v778
        %794 = vmatprep.subr.mxu0 0.0
        %795 = vmatpush1.msra.mxu0 %v777
        %796 = vmatprep.subr.mxu0 0.0
        %797 = vmatpush1.msra.mxu0 %v776
        %798 = vmatprep.subr.mxu0 0.0
        %799 = vmatpush1.msra.mxu0 %v775
        %800 = vmatprep.subr.mxu0 0.0
        %801 = vmatpush1.msra.mxu0 %v774
        %802 = vmatprep.subr.mxu0 0.0
        %803 = vmatpush1.msra.mxu0 %v773
        %804 = vmatprep.subr.mxu0 0.0
        %805 = vmatpush1.msra.mxu0 %v772
        %806 = vmatprep.subr.mxu0 0.0
        %807 = vmatpush1.msra.mxu0 %v771
        %808 = vmatprep.subr.mxu0 0.0
        %809 = vmatpush1.msra.mxu0 %v770
        %810 = vmatprep.subr.mxu0 0.0
        %811 = vmatpush1.msra.mxu0 %v769
        %812 = vmatprep.subr.mxu0 0.0
        %813 = vmatpush1.msra.mxu0 %v768
        %814 = vmatprep.subr.mxu0 0.0
        %815 = vmatpush1.msra.mxu0 %v767
        %816 = vmatprep.subr.mxu0 0.0
        %817 = vmatpush1.msra.mxu0 %v766
        %818 = vmatprep.subr.mxu0 0.0
        %819 = vmatpush1.msra.mxu0 %v765
        %820 = vmatprep.subr.mxu0 0.0
        %821 = vmatpush2.msra.mxu0 0.0
        %822 = vmatprep.subr.mxu0 0.0
        %823 = vmatpush2.msra.mxu0 0.0
        %824 = vmatprep.subr.mxu0 0.0
        %825 = vmatpush2.msra.mxu0 0.0
        %826 = vmatprep.subr.mxu0 0.0
        %827 = vmatpush2.msra.mxu0 0.0
        %828 = vmatprep.subr.mxu0 0.0
        %829 = vmatpush2.msra.mxu0 0.0
        %830 = vmatprep.subr.mxu0 0.0
        %831 = vmatpush2.msra.mxu0 0.0
        %832 = vmatprep.subr.mxu0 0.0
        %833 = vmatpush2.msra.mxu0 0.0
        %834 = vmatprep.subr.mxu0 0.0
        %835 = vmatpush2.msra.mxu0 0.0
        %836 = vmatprep.subr.mxu0 0.0
        %837 = vmatpush2.msra.mxu0 0.0
        %838 = vmatprep.subr.mxu0 0.0
        %839 = vmatpush2.msra.mxu0 0.0
        %840 = vmatprep.subr.mxu0 0.0
        %841 = vmatpush2.msra.mxu0 0.0
        %842 = vmatprep.subr.mxu0 0.0
        %843 = vmatpush2.msra.mxu0 0.0
        %844 = vmatprep.subr.mxu0 0.0
        %845 = vmatpush2.msra.mxu0 0.0
        %846 = vmatprep.subr.mxu0 0.0
        %847 = vmatpush2.msra.mxu0 0.0
        %848 = vmatprep.subr.mxu0 0.0
        %849 = vmatpush2.msra.mxu0 0.0
        %850 = vmatprep.subr.mxu0 0.0
        %851 = vmatpush2.msra.mxu0 0.0
        %852 = vmatprep.mubr.f32.mxu0 0.0
        %853 = vmatmul.mubr.f32.gmra.mxu0 %v783
        %v854 = vpop.f32.mrf.mxu0
        %v855 = vadd.f32 0.0, %v854
        %v856 = vpop.f32.mrf.mxu0
        %857 = vmatprep.mubr.f32.mxu0 0.0
        %858 = vmatmul.mubr.f32.gmra.mxu0 %v785
        %v859 = vpop.f32.mrf.mxu0
        %v860 = vadd.f32 0.0, %v859
        %v861 = vpop.f32.mrf.mxu0
        %862 = vdwg.mxu0
        %v863 = vadd.f32 %v756, %v855
        %v864 = vadd.f32 %v761, %v860
        %v866 = vlaneseq
        %v867 = vshrl.u32 %v866, 7
        %v868 = vsub.s32 0, %v867
        %v869 = vrot.slane %v257, %v868
        %v871 = vadd.f32 %v863, %v869
        %v872 = vadd.f32 %v864, %v869
        %v873 = vadd.f32 %v871, %v297
        %v874 = vadd.f32 %v872, %v299
        %v875 = vmax.f32 %v873, 0.0
        %v876 = vmax.f32 %v874, 0.0
        %877 = vst [vmem:[%s247] sm:$0xff] %v875
        %878 = vst [vmem:[%s247 + $0x8] sm:$0xff] %v876
        %s879 = sand.u32 %s139, 1
        %s880 = scalar_lea.sflag [#allocation5], %s879
        %s881 = sand.u32 %s139, 1
        %s882 = smul.addr %s881, 16
        %s883 = scalar_lea.vmem [#allocation8], %s882
        // Predicated region
        $region49: #{tpu_custom_call.1} parent=39 // pred_check
          %p884 = pneg %p149
        $region50: #{tpu_custom_call.1} parent=39 // pred_check_branch
          %886 = sbr.rel (%p884) target = $region52
        $region51: #{tpu_custom_call.1} parent=39 // pred_region
          %s888 = ssub.s32 256, 256
          %889 = vsyncadd %s880, %s888
          %s890 = smul.addr %s21, 2
          %s891 = smul.addr %s890, 128
          %s892 = scalar_lea.hbm %s5, %s891
          %s893 = sshll.u32 %s883, 4
          %s894 = int_to_ptr.vmem [resolvable:$true] %s893
          %899 = dma.vmem_to_hbm [thread:$0]  %s894, 256, %s892, %s880, 128, 128, 8
        $region52: #{tpu_custom_call.1} parent=39 // pred_fallthru
          _
      $region40: #{tpu_custom_call.1} parent=5 // pred_fallthru
        _
      %p900 = scmp.le.s32.totalorder 2, %s16
      // Predicated region
      $region53: #{tpu_custom_call.1} parent=5 // pred_check
        %p901 = pneg %p900
      $region54: #{tpu_custom_call.1} parent=5 // pred_check_branch
        %903 = sbr.rel (%p901) target = $region56
      $region55: #{tpu_custom_call.1} parent=5 // pred_region
        %s904 = ssub.s32 %s16, 2
        // Predicated region
        $region57: #{tpu_custom_call.1} parent=55 // pred_check
          %p905 = pneg %p155
        $region58: #{tpu_custom_call.1} parent=55 // pred_check_branch
          %907 = sbr.rel (%p905) target = $region60
        $region59: #{tpu_custom_call.1} parent=55 // pred_region
          %s908 = sand.u32 %s140, 1
          %s909 = scalar_lea.sflag [#allocation5], %s908
          %s910 = sand.u32 %s140, 1
          %s911 = smul.addr %s910, 16
          %s912 = scalar_lea.vmem [#allocation8], %s911
          %913 = dma.done %s909, 256
        $region60: #{tpu_custom_call.1} parent=55 // pred_fallthru
          _
      $region56: #{tpu_custom_call.1} parent=5 // pred_fallthru
        _
    $region6: #{tpu_custom_call.1} parent=1 // loop_footer
      %s20 = sadd.s32 1, %s16
    $region7: #{tpu_custom_call.1} parent=1 // loop_footer_branch
      %15 = sbr.rel target = $region3
    $region8: #{tpu_custom_call.1} parent=1 // loop_exit
      _
    %914 = vsyncpa [#allocation4], 1
    %s915 = scalar_lea.sflag [#allocation4], 1
    %916 = vsyncpa %s915, 1
    %917 = vsyncpa [#allocation7], 1
    %918 = vsyncpa [#allocation5], 1
    %s919 = scalar_lea.sflag [#allocation5], 1
    %920 = vsyncpa %s919, 1

</llo_original>
